<compile_context>
chip_gen: v7x
topology: tpu7x:2x2x1
jax: 0.10.0
libtpu: 0.0.40
codegen_flags: <defaults>
</compile_context>

<pallas_src>
import functools

import jax
import jax.numpy as jnp
from jax.experimental import pallas as pl
from jax.experimental.pallas import tpu as pltpu

EPS = 1e-6


def _round_up(v, m):
    return (v + m - 1) // m * m


def _residual_kernel(x_ref, w_ref, wb_ref, a_ref, b_ref, o_ref, *,
                     tn, compute_dtype, approx_recip):
    # x_ref:  (TM, D)  row tile of the input (input dtype)
    # w_ref:  (D, TN)  column tile of the Linear weight (compute_dtype)
    # wb_ref: (1, TN)  column tile of the Linear bias (f32)
    # a_ref:  (1, D)   LayerNorm scale (f32)
    # b_ref:  (1, D)   LayerNorm shift (f32)
    # o_ref:  (TM, TN) output tile
    x = x_ref[...].astype(jnp.float32)
    d = x.shape[-1]

    # --- LayerNorm (torch semantics: unbiased std, eps added to std not var) ---
    mean = jnp.mean(x, axis=-1, keepdims=True)
    centered = x - mean
    var_unbiased = jnp.sum(centered * centered, axis=-1, keepdims=True) * (1.0 / (d - 1))
    std = jnp.sqrt(var_unbiased)
    inv = pl.reciprocal(std + EPS, approx=approx_recip)   # EUP slot when approx
    a = a_ref[...].astype(jnp.float32)
    b = b_ref[...].astype(jnp.float32)
    normed = (a * (centered * inv) + b).astype(compute_dtype)

    # --- sublayer Linear(D, D): one N-column tile on the MXU, f32 accumulation ---
    y = jnp.dot(normed, w_ref[...], preferred_element_type=jnp.float32)  # (TM, TN)
    y = y + wb_ref[...].astype(jnp.float32)

    # --- residual add against the matching column slice of x ---
    if tn == d:
        x_cols = x
    else:
        j = pl.program_id(1)
        col0 = pl.multiple_of(j * tn, tn)
        x_cols = x_ref[:, pl.ds(col0, tn)].astype(jnp.float32)
    o_ref[...] = (x_cols + y).astype(o_ref.dtype)


def _pick_tn(D, c_itemsize, resident_budget=8 * 1024 * 1024):
    """Full resident weight if it fits the budget; otherwise 128-aligned column tiles."""
    if D * D * c_itemsize <= resident_budget or D % 128 != 0:
        return D
    for tn in (512, 256, 128):
        if D % tn == 0:
            return tn
    return D


def _pick_tm(M, D, x_itemsize, tm_max=512):
    """Row tile: <= ~2 MiB per x tile, multiple of 8, and >= 2 row tiles total."""
    by_vmem = max(8, (2 * 1024 * 1024) // max(1, D * x_itemsize))
    tm = min(tm_max, by_vmem)
    tm = max(8, (tm // 8) * 8)
    # Guarantee at least two row tiles so both v7x TensorCores receive work.
    tm = min(tm, _round_up(pl.cdiv(M, 2), 8))
    return max(8, tm)


def _weight_block_spec(D, tn, n_cols):
    if n_cols == 1:
        idx = lambda i, j: (0, 0)
        try:
            # Constant index_map -> DMA'd once; single buffer frees D*tn*itemsize VMEM.
            return pl.BlockSpec((D, tn), idx, pipeline_mode=pl.Buffered(1))
        except TypeError:
            # Older jax without pipeline_mode: fall back to default buffering.
            return pl.BlockSpec((D, tn), idx)
    return pl.BlockSpec((D, tn), lambda i, j: (0, j))


def residual_forward(x, w, wb, a, b, *, compute_dtype=jnp.bfloat16, tm_max=512):
    """Fused Residual forward: x + (LayerNorm(x) @ w + wb).

    x: (B, S, D), f32 or bf16 (output matches x.dtype).
    w: (D, D) with y = normed @ w + wb (== torch Linear weight transposed).
    """
    B, S, D = x.shape
    assert D > 1, "Bessel-corrected std requires D > 1"
    M = B * S

    x_itemsize = jnp.dtype(x.dtype).itemsize
    c_itemsize = jnp.dtype(compute_dtype).itemsize

    tn = _pick_tn(D, c_itemsize)
    n_cols = D // tn
    tm = _pick_tm(M, D, x_itemsize, tm_max=tm_max)
    n_rows = pl.cdiv(M, tm)            # ragged tail handled by Pallas (masked stores)

    x2 = x.reshape(M, D)               # no pad, no post-slice -> no extra HBM passes
    w_c = w.astype(compute_dtype)
    wb2 = wb.reshape(1, D).astype(jnp.float32)
    a2 = a.reshape(1, D).astype(jnp.float32)
    b2 = b.reshape(1, D).astype(jnp.float32)

    # VMEM budget: double-buffered x/out tiles, weight tile (single-buffered when
    # resident), params, plus the f32 LayerNorm temporaries and compute-dtype
    # `normed` materialized per row tile. 1.5x headroom, clamped to 48 MiB so
    # compiler-internal scratch still fits inside v7x's 64 MiB physical VMEM/TC.
    w_bufs = 1 if n_cols == 1 else 2
    est = (2 * tm * D * x_itemsize          # x tiles (double-buffered)
           + 2 * tm * tn * x_itemsize       # out tiles (double-buffered)
           + w_bufs * D * tn * c_itemsize   # weight buffer(s)
           + 4 * D * 4                      # params
           + 4 * tm * D * 4                 # f32 LN temporaries
           + tm * D * c_itemsize            # normed in compute dtype
           + tm * tn * 4)                   # f32 matmul result
    vmem_limit = int(min(48 * 1024 * 1024, max(32 * 1024 * 1024, int(1.5 * est))))

    cost = pl.CostEstimate(
        flops=2 * M * D * D + 10 * M * D,
        transcendentals=2 * M,
        bytes_accessed=2 * M * D * x_itemsize + D * D * c_itemsize + 4 * D * 4,
    )

    kernel = functools.partial(
        _residual_kernel,
        tn=tn,
        compute_dtype=compute_dtype,
        approx_recip=(jnp.dtype(compute_dtype) != jnp.dtype(jnp.float32)),
    )

    out = pl.pallas_call(
        kernel,
        out_shape=jax.ShapeDtypeStruct((M, D), x.dtype),
        grid_spec=pltpu.PrefetchScalarGridSpec(
            num_scalar_prefetch=0,
            grid=(n_rows, n_cols),
            in_specs=[
                pl.BlockSpec((tm, D), lambda i, j: (i, 0)),   # x rows (revisited over j)
                _weight_block_spec(D, tn, n_cols),            # Linear weight
                pl.BlockSpec((1, tn), lambda i, j: (0, j)),   # Linear bias column tile
                pl.BlockSpec((1, D), lambda i, j: (0, 0)),    # LayerNorm a
                pl.BlockSpec((1, D), lambda i, j: (0, 0)),    # LayerNorm b
            ],
            out_specs=pl.BlockSpec((tm, tn), lambda i, j: (i, j)),
        ),
        compiler_params=pltpu.CompilerParams(
            dimension_semantics=("parallel", "arbitrary"),
            vmem_limit_bytes=vmem_limit,
        ),
        cost_estimate=cost,
    )(x2, w_c, wb2, a2, b2)

    return out.reshape(B, S, D)


def reference_forward(x, w, wb, a, b):
    """Pure-JAX f32 reference mirroring the PyTorch module."""
    x = x.astype(jnp.float32)
    mean = jnp.mean(x, axis=-1, keepdims=True)
    centered = x - mean
    var_unbiased = jnp.sum(centered * centered, axis=-1, keepdims=True) / (x.shape[-1] - 1)
    std = jnp.sqrt(var_unbiased)
    normed = a * centered / (std + EPS) + b
    y = normed @ w.astype(jnp.float32) + wb
    return x + y


if __name__ == "__main__":
    key = jax.random.PRNGKey(0)
    B, S, D = 2, 8, 32  # batch=2, seq=8, hidden=32

    k_x, k_w, k_wb = jax.random.split(key, 3)
    x = jax.random.normal(k_x, (B, S, D), dtype=jnp.float32)

    # LayerNorm params: a = ones, b = zeros (as in the module __init__).
    a = jnp.ones((D,), dtype=jnp.float32)
    b = jnp.zeros((D,), dtype=jnp.float32)
    # Sublayer (Linear(D, D)) params, deterministic random.
    w = jax.random.normal(k_w, (D, D), dtype=jnp.float32) * 0.05
    wb = jax.random.normal(k_wb, (D,), dtype=jnp.float32) * 0.05

    out = residual_forward(x, w, wb, a, b)
    out = jax.block_until_ready(out)

    ref = reference_forward(x, w, wb, a, b)
    assert out.shape == (B, S, D)
    # bf16 MXU operands + approximate EUP reciprocal => documented looser tolerance
    # vs. the f32 reference (use compute_dtype=jnp.float32 for tighter accuracy).
    assert jnp.allclose(out, ref, atol=2e-2, rtol=2e-2), "mismatch vs reference"

    print("KERNEL_OK")
</pallas_src>

<mosaic_0001>
module attributes {stable_mosaic.version = 11 : i64} {
  func.func @_residual_kernel(%arg0: i32, %arg1: i32, %arg2: memref<8x32xf32, #tpu.memory_space<vmem>>, %arg3: memref<32x32xbf16, #tpu.memory_space<vmem>>, %arg4: memref<1x32xf32, #tpu.memory_space<vmem>>, %arg5: memref<1x32xf32, #tpu.memory_space<vmem>>, %arg6: memref<1x32xf32, #tpu.memory_space<vmem>>, %arg7: memref<8x32xf32, #tpu.memory_space<vmem>>) attributes {dimension_semantics = [#tpu.dimension_semantics<parallel>, #tpu.dimension_semantics<arbitrary>], iteration_bounds = array<i64: 2, 1>, scalar_prefetch = 0 : i64, scratch_operands = 0 : i64, tpu.core_type = #tpu.core_type<tc>, window_params = [{transform_indices = @transform_0, window_bounds = array<i64: 8, 32>}, {pipeline_mode = #tpu.pipeline_mode<synchronous>, transform_indices = @transform_1, window_bounds = array<i64: 32, 32>}, {transform_indices = @transform_2, window_bounds = array<i64: 1, 32>}, {pipeline_mode = #tpu.pipeline_mode<synchronous>, transform_indices = @transform_3, window_bounds = array<i64: 1, 32>}, {pipeline_mode = #tpu.pipeline_mode<synchronous>, transform_indices = @transform_4, window_bounds = array<i64: 1, 32>}, {transform_indices = @transform_5, window_bounds = array<i64: 8, 32>}]} {
    %c0 = arith.constant 0 : index
    %c0_0 = arith.constant 0 : index
    %0 = vector.load %arg2[%c0, %c0_0] : memref<8x32xf32, #tpu.memory_space<vmem>>, vector<8x32xf32>
    %cst = arith.constant dense<0.000000e+00> : vector<8xf32>
    %1 = vector.multi_reduction <add>, %0, %cst [1] : vector<8x32xf32> to vector<8xf32>
    %2 = vector.shape_cast %1 : vector<8xf32> to vector<8x1xf32>
    %cst_1 = arith.constant 3.200000e+01 : f32
    %3 = vector.broadcast %cst_1 : f32 to vector<8x1xf32>
    %4 = arith.divf %2, %3 : vector<8x1xf32>
    %5 = vector.broadcast %4 : vector<8x1xf32> to vector<8x32xf32>
    %6 = arith.subf %0, %5 : vector<8x32xf32>
    %7 = arith.mulf %6, %6 : vector<8x32xf32>
    %cst_2 = arith.constant dense<0.000000e+00> : vector<8xf32>
    %8 = vector.multi_reduction <add>, %7, %cst_2 [1] : vector<8x32xf32> to vector<8xf32>
    %9 = vector.shape_cast %8 : vector<8xf32> to vector<8x1xf32>
    %cst_3 = arith.constant 0.0322580636 : f32
    %10 = vector.broadcast %cst_3 : f32 to vector<8x1xf32>
    %11 = arith.mulf %9, %10 : vector<8x1xf32>
    %12 = math.sqrt %11 : vector<8x1xf32>
    %cst_4 = arith.constant 9.99999997E-7 : f32
    %13 = vector.broadcast %cst_4 : f32 to vector<8x1xf32>
    %14 = arith.addf %12, %13 : vector<8x1xf32>
    %15 = tpu.reciprocal %14 {approx = true} : vector<8x1xf32> -> vector<8x1xf32>
    %c0_5 = arith.constant 0 : index
    %c0_6 = arith.constant 0 : index
    %16 = vector.load %arg5[%c0_5, %c0_6] : memref<1x32xf32, #tpu.memory_space<vmem>>, vector<1x32xf32>
    %c0_7 = arith.constant 0 : index
    %c0_8 = arith.constant 0 : index
    %17 = vector.load %arg6[%c0_7, %c0_8] : memref<1x32xf32, #tpu.memory_space<vmem>>, vector<1x32xf32>
    %18 = vector.broadcast %15 : vector<8x1xf32> to vector<8x32xf32>
    %19 = arith.mulf %6, %18 : vector<8x32xf32>
    %20 = vector.broadcast %16 : vector<1x32xf32> to vector<8x32xf32>
    %21 = arith.mulf %20, %19 : vector<8x32xf32>
    %22 = vector.broadcast %17 : vector<1x32xf32> to vector<8x32xf32>
    %23 = arith.addf %21, %22 : vector<8x32xf32>
    %24 = arith.truncf %23 : vector<8x32xf32> to vector<8x32xbf16>
    %c0_9 = arith.constant 0 : index
    %c0_10 = arith.constant 0 : index
    %25 = vector.load %arg3[%c0_9, %c0_10] : memref<32x32xbf16, #tpu.memory_space<vmem>>, vector<32x32xbf16>
    %cst_11 = arith.constant dense<0.000000e+00> : vector<8x32xf32>
    %26 = tpu.matmul %24, %25, %cst_11 {dimension_numbers = #tpu.dot_dimension_numbers<[1], [0], [0], [1], [0, 0, 1, 1], [], []>} : vector<8x32xbf16>, vector<32x32xbf16>, vector<8x32xf32> -> vector<8x32xf32>
    %c0_12 = arith.constant 0 : index
    %c0_13 = arith.constant 0 : index
    %27 = vector.load %arg4[%c0_12, %c0_13] : memref<1x32xf32, #tpu.memory_space<vmem>>, vector<1x32xf32>
    %28 = vector.broadcast %27 : vector<1x32xf32> to vector<8x32xf32>
    %29 = arith.addf %26, %28 : vector<8x32xf32>
    %30 = arith.addf %0, %29 : vector<8x32xf32>
    %c0_14 = arith.constant 0 : index
    %c0_15 = arith.constant 0 : index
    %31 = vector.load %arg7[%c0_14, %c0_15] : memref<8x32xf32, #tpu.memory_space<vmem>>, vector<8x32xf32>
    tpu.vector_store %arg7[%c0_14, %c0_15], %30 {strides = array<i32>} : memref<8x32xf32, #tpu.memory_space<vmem>>, vector<8x32xf32>,
    return
  }
  func.func @transform_0(%arg0: i32, %arg1: i32) -> (i32, i32) {
    %c0_i32 = arith.constant 0 : i32
    %c0_i32_0 = arith.constant 0 : i32
    return %arg0, %c0_i32 : i32, i32
  }
  func.func @transform_1(%arg0: i32, %arg1: i32) -> (i32, i32) {
    %c0_i32 = arith.constant 0 : i32
    %c0_i32_0 = arith.constant 0 : i32
    %c0_i32_1 = arith.constant 0 : i32
    return %c0_i32, %c0_i32_0 : i32, i32
  }
  func.func @transform_2(%arg0: i32, %arg1: i32) -> (i32, i32) {
    %c0_i32 = arith.constant 0 : i32
    %c0_i32_0 = arith.constant 0 : i32
    return %c0_i32, %arg1 : i32, i32
  }
  func.func @transform_3(%arg0: i32, %arg1: i32) -> (i32, i32) {
    %c0_i32 = arith.constant 0 : i32
    %c0_i32_0 = arith.constant 0 : i32
    %c0_i32_1 = arith.constant 0 : i32
    return %c0_i32, %c0_i32_0 : i32, i32
  }
  func.func @transform_4(%arg0: i32, %arg1: i32) -> (i32, i32) {
    %c0_i32 = arith.constant 0 : i32
    %c0_i32_0 = arith.constant 0 : i32
    %c0_i32_1 = arith.constant 0 : i32
    return %c0_i32, %c0_i32_0 : i32, i32
  }
  func.func @transform_5(%arg0: i32, %arg1: i32) -> (i32, i32) {
    %c0_i32 = arith.constant 0 : i32
    return %arg0, %arg1 : i32, i32
  }
}

</mosaic_0001>

<llo_original>
// kernel: tpu_custom_call.1
$region0: #{tpu_custom_call.1}
  #allocation0 [shape = 'u32[]', space=smem, size = 0x4, offset = 0x4, fixed_abs, tag = 'smem constant byte address 0x4 - core index']
  #allocation1 [shape = 'u32[144,128]{1,0:T(1,128)}', space=vmem, size = 0x12000, scoped, tag = 'internal scratch']
  %s0 = inlined_call_operand.hbm [shape: f32[16,32], index: 0, kind: input, shape index: {}]
  %s1 = inlined_call_operand.hbm [shape: bf16[32,32], index: 1, kind: input, shape index: {}]
  %s2 = inlined_call_operand.vmem [shape: f32[1,32], index: 2, kind: input, shape index: {}]
  %s3 = inlined_call_operand.vmem [shape: f32[1,32], index: 3, kind: input, shape index: {}]
  %s4 = inlined_call_operand.vmem [shape: f32[1,32], index: 4, kind: input, shape index: {}]
  %s5 = inlined_call_operand.hbm [shape: f32[16,32], index: 5, kind: output, shape index: {}]
  %s6 = sld [smem:[#allocation0]]
  $region61: #{tpu_custom_call.1} parent=0
    _
  %s8 = ssub.s32 1, %s6
  %s9 = scalar_select 0, %s8, %s6
  $region1: #{tpu_custom_call.1} parent=0
    #allocation2 [shape = 'u8[8192]{0}', space=vmem, size = 0x2000, scoped, tag = 'input window, operand 0']
    #allocation3 [shape = 's32[2]{0}', space=sflag, size = 0x8, scoped, tag = 'scoped memory for tpu_custom_call.1']
    #allocation4 [shape = 's32[2]{0}', space=sflag, size = 0x8, scoped, tag = 'scoped memory for tpu_custom_call.1']
    #allocation5 [shape = 'u8[8192]{0}', space=vmem, size = 0x2000, scoped, tag = 'input window, operand 1, single buffered']
    #allocation6 [shape = 's32[1]{0}', space=sflag, size = 0x4, scoped, tag = 'scoped memory for tpu_custom_call.1']
    #allocation7 [shape = 'u8[8192]{0}', space=vmem, size = 0x2000, scoped, tag = 'output window, operand 0']
    %10 = vsyncpa [#allocation3], 0
    %s11 = scalar_lea.sflag [#allocation3], 1
    %12 = vsyncpa %s11, 0
    %13 = vsyncpa [#allocation6], 0
    %14 = vsyncpa [#allocation4], 0
    %s15 = scalar_lea.sflag [#allocation4], 1
    %16 = vsyncpa %s15, 0
    loop: start=0, step=1, limit=4
    $region2: #{tpu_custom_call.1} parent=1 // loop_pre_header
      _
    $region3: #{tpu_custom_call.1} parent=1 // loop_header
      %s18 = sphi 0, %s22
      %p19 = scmp.ge.s32.totalorder %s18, 4
      %s25 = sphi 0, %s37
      %s26 = sphi 0, %s33
      %s27 = sphi 0, %s25
      %s28 = sphi 0, %s26
      %s29 = sphi 0, %s27
      %s30 = sphi 0, %s28
      %s40 = sphi 0, %s42
      %s43 = sphi 0, %s40
      %s44 = sphi 0, %s43
      %s60 = sphi 0, %s44
      %s64 = sphi 0, %s64
      %s66 = sphi 0, %s64
      %s67 = sphi 0, %s66
      %s81 = sphi 0, %s67
      %s87 = sphi 0, %s89
      %s90 = sphi 0, %s87
      %s91 = sphi 0, %s90
      %s107 = sphi 0, %s91
      %s111 = sphi 0, %s111
      %s113 = sphi 0, %s111
      %s114 = sphi 0, %s113
      %s128 = sphi 0, %s114
      %s132 = sphi 0, %s132
      %s134 = sphi 0, %s132
      %s135 = sphi 0, %s134
      %s149 = sphi 0, %s135
      %s157 = sphi 0, %s159
      %s160 = sphi 0, %s157
      %s161 = sphi 0, %s160
      %s177 = sphi 0, %s161
    $region4: #{tpu_custom_call.1} parent=1 // loop_header_branch
      %21 = sbr.rel (%p19) target = $region8
    $region5: #{tpu_custom_call.1} parent=1 // loop_body
      %s23 = ssub.s32 %s18, 1
      %s24 = ssub.s32 %s18, 2
      %s31 = sadd.s32 1, %s26
      %p32 = scmp.ge.s32.totalorder %s31, 1
      %s33 = scalar_select %p32, 0, %s31
      %s34 = sadd.s32 1, %s25
      %s35 = scalar_select %p32, %s34, %s25
      %p36 = scmp.ge.s32.totalorder %s35, 2
      %s37 = scalar_select %p36, 0, %s35
      %s38 = ssub.s32 %s25, %s37
      %p39 = scmp.eq.s32.totalorder %s38, 0
      %s41 = sadd.s32 %s40, 1
      %s42 = scalar_select %p39, %s40, %s41
      %p45 = pneg %p39
      %p46 = scmp.eq.s32.totalorder %s18, 1
      %p47 = por %p45, %p46
      %p48 = scmp.ne.s32.totalorder %s40, %s43
      %p49 = scmp.eq.s32.totalorder %s18, 0
      %p50 = por %p48, %p49
      %p51 = scmp.ne.s32.totalorder %s40, %s43
      %p52 = scmp.eq.s32.totalorder %s23, 1
      %p53 = por %p51, %p52
      %p54 = scmp.ne.s32.totalorder %s43, %s44
      %p55 = scmp.eq.s32.totalorder %s23, 0
      %p56 = por %p54, %p55
      %p57 = scmp.ne.s32.totalorder %s43, %s44
      %p58 = scmp.eq.s32.totalorder %s24, 1
      %p59 = por %p57, %p58
      %p61 = scmp.ne.s32.totalorder %s44, %s60
      %p62 = scmp.eq.s32.totalorder %s24, 0
      %p63 = por %p61, %p62
      %s65 = sadd.s32 %s64, 1
      %p68 = scmp.eq.s32.totalorder %s18, 1
      %p69 = scmp.ne.s32.totalorder %s64, %s66
      %p70 = scmp.eq.s32.totalorder %s18, 0
      %p71 = por %p69, %p70
      %p72 = scmp.ne.s32.totalorder %s64, %s66
      %p73 = scmp.eq.s32.totalorder %s23, 1
      %p74 = por %p72, %p73
      %p75 = scmp.ne.s32.totalorder %s66, %s67
      %p76 = scmp.eq.s32.totalorder %s23, 0
      %p77 = por %p75, %p76
      %p78 = scmp.ne.s32.totalorder %s66, %s67
      %p79 = scmp.eq.s32.totalorder %s24, 1
      %p80 = por %p78, %p79
      %p82 = scmp.ne.s32.totalorder %s67, %s81
      %p83 = scmp.eq.s32.totalorder %s24, 0
      %p84 = por %p82, %p83
      %s85 = ssub.s32 %s26, %s33
      %p86 = scmp.eq.s32.totalorder %s85, 0
      %s88 = sadd.s32 %s87, 1
      %s89 = scalar_select %p86, %s87, %s88
      %p92 = pneg %p86
      %p93 = scmp.eq.s32.totalorder %s18, 1
      %p94 = por %p92, %p93
      %p95 = scmp.ne.s32.totalorder %s87, %s90
      %p96 = scmp.eq.s32.totalorder %s18, 0
      %p97 = por %p95, %p96
      %p98 = scmp.ne.s32.totalorder %s87, %s90
      %p99 = scmp.eq.s32.totalorder %s23, 1
      %p100 = por %p98, %p99
      %p101 = scmp.ne.s32.totalorder %s90, %s91
      %p102 = scmp.eq.s32.totalorder %s23, 0
      %p103 = por %p101, %p102
      %p104 = scmp.ne.s32.totalorder %s90, %s91
      %p105 = scmp.eq.s32.totalorder %s24, 1
      %p106 = por %p104, %p105
      %p108 = scmp.ne.s32.totalorder %s91, %s107
      %p109 = scmp.eq.s32.totalorder %s24, 0
      %p110 = por %p108, %p109
      %s112 = sadd.s32 %s111, 1
      %p115 = scmp.eq.s32.totalorder %s18, 1
      %p116 = scmp.ne.s32.totalorder %s111, %s113
      %p117 = scmp.eq.s32.totalorder %s18, 0
      %p118 = por %p116, %p117
      %p119 = scmp.ne.s32.totalorder %s111, %s113
      %p120 = scmp.eq.s32.totalorder %s23, 1
      %p121 = por %p119, %p120
      %p122 = scmp.ne.s32.totalorder %s113, %s114
      %p123 = scmp.eq.s32.totalorder %s23, 0
      %p124 = por %p122, %p123
      %p125 = scmp.ne.s32.totalorder %s113, %s114
      %p126 = scmp.eq.s32.totalorder %s24, 1
      %p127 = por %p125, %p126
      %p129 = scmp.ne.s32.totalorder %s114, %s128
      %p130 = scmp.eq.s32.totalorder %s24, 0
      %p131 = por %p129, %p130
      %s133 = sadd.s32 %s132, 1
      %p136 = scmp.eq.s32.totalorder %s18, 1
      %p137 = scmp.ne.s32.totalorder %s132, %s134
      %p138 = scmp.eq.s32.totalorder %s18, 0
      %p139 = por %p137, %p138
      %p140 = scmp.ne.s32.totalorder %s132, %s134
      %p141 = scmp.eq.s32.totalorder %s23, 1
      %p142 = por %p140, %p141
      %p143 = scmp.ne.s32.totalorder %s134, %s135
      %p144 = scmp.eq.s32.totalorder %s23, 0
      %p145 = por %p143, %p144
      %p146 = scmp.ne.s32.totalorder %s134, %s135
      %p147 = scmp.eq.s32.totalorder %s24, 1
      %p148 = por %p146, %p147
      %p150 = scmp.ne.s32.totalorder %s135, %s149
      %p151 = scmp.eq.s32.totalorder %s24, 0
      %p152 = por %p150, %p151
      %s153 = ssub.s32 %s25, %s37
      %s154 = ssub.s32 %s26, %s33
      %s155 = sor.u32 %s153, %s154
      %p156 = scmp.eq.s32.totalorder %s155, 0
      %s158 = sadd.s32 %s157, 1
      %s159 = scalar_select %p156, %s157, %s158
      %p162 = pneg %p156
      %p163 = scmp.eq.s32.totalorder %s18, 1
      %p164 = por %p162, %p163
      %p165 = scmp.ne.s32.totalorder %s157, %s160
      %p166 = scmp.eq.s32.totalorder %s18, 0
      %p167 = por %p165, %p166
      %p168 = scmp.ne.s32.totalorder %s157, %s160
      %p169 = scmp.eq.s32.totalorder %s23, 1
      %p170 = por %p168, %p169
      %p171 = scmp.ne.s32.totalorder %s160, %s161
      %p172 = scmp.eq.s32.totalorder %s23, 0
      %p173 = por %p171, %p172
      %p174 = scmp.ne.s32.totalorder %s160, %s161
      %p175 = scmp.eq.s32.totalorder %s24, 1
      %p176 = por %p174, %p175
      %p178 = scmp.ne.s32.totalorder %s161, %s177
      %p179 = scmp.eq.s32.totalorder %s24, 0
      %p180 = por %p178, %p179
      %p181 = scmp.le.s32.totalorder 1, %s18
      %p182 = scmp.lt.s32.totalorder %s18, 3
      %p183 = pnand %p181, %p182
      %p184 = pneg %p183
      // Predicated region
      $region9: #{tpu_custom_call.1} parent=5 // pred_check
        _
      $region10: #{tpu_custom_call.1} parent=5 // pred_check_branch
        %186 = sbr.rel (%p183) target = $region12
      $region11: #{tpu_custom_call.1} parent=5 // pred_region
        %s187 = ssub.s32 %s18, 1
        // Predicated region
        $region13: #{tpu_custom_call.1} parent=11 // pred_check
          %p188 = pneg %p77
        $region14: #{tpu_custom_call.1} parent=11 // pred_check_branch
          %190 = sbr.rel (%p188) target = $region16
        $region15: #{tpu_custom_call.1} parent=11 // pred_region
          %s192 = ssub.s32 256, 256
          %193 = vsyncadd [#allocation6], %s192
          %s194 = sshll.u32 [#allocation5], 4
          %s195 = int_to_ptr.vmem [resolvable:$true] %s194
          %200 = dma.hbm_to_vmem [thread:$0]  %s1, 256, %s195, [#allocation6], 64, 64, 4
        $region16: #{tpu_custom_call.1} parent=11 // pred_fallthru
          _
        // Predicated region
        $region17: #{tpu_custom_call.1} parent=11 // pred_check
          %p201 = pneg %p103
        $region18: #{tpu_custom_call.1} parent=11 // pred_check_branch
          %203 = sbr.rel (%p201) target = $region20
        $region19: #{tpu_custom_call.1} parent=11 // pred_region
          %p204 = scmp.lt.s32.totalorder %s28, 0
          %s205 = scalar_select %p204, %s28, 0
          %s206 = scalar_lea.vmem %s2, %s205
        $region20: #{tpu_custom_call.1} parent=11 // pred_fallthru
          _
        // Predicated region
        $region21: #{tpu_custom_call.1} parent=11 // pred_check
          %p207 = pneg %p124
        $region22: #{tpu_custom_call.1} parent=11 // pred_check_branch
          %209 = sbr.rel (%p207) target = $region24
        $region23: #{tpu_custom_call.1} parent=11 // pred_region
          _
        $region24: #{tpu_custom_call.1} parent=11 // pred_fallthru
          _
        // Predicated region
        $region25: #{tpu_custom_call.1} parent=11 // pred_check
          %p210 = pneg %p145
        $region26: #{tpu_custom_call.1} parent=11 // pred_check_branch
          %212 = sbr.rel (%p210) target = $region28
        $region27: #{tpu_custom_call.1} parent=11 // pred_region
          _
        $region28: #{tpu_custom_call.1} parent=11 // pred_fallthru
          _
      $region12: #{tpu_custom_call.1} parent=5 // pred_fallthru
        _
      %p213 = scmp.lt.s32.totalorder %s18, 2
      // Predicated region
      $region29: #{tpu_custom_call.1} parent=5 // pred_check
        %p214 = pneg %p213
      $region30: #{tpu_custom_call.1} parent=5 // pred_check_branch
        %216 = sbr.rel (%p214) target = $region32
      $region31: #{tpu_custom_call.1} parent=5 // pred_region
        // Predicated region
        $region33: #{tpu_custom_call.1} parent=31 // pred_check
          %p217 = pneg %p50
        $region34: #{tpu_custom_call.1} parent=31 // pred_check_branch
          %219 = sbr.rel (%p217) target = $region36
        $region35: #{tpu_custom_call.1} parent=31 // pred_region
          %s220 = sand.u32 %s40, 1
          %s221 = scalar_lea.sflag [#allocation3], %s220
          %s222 = sand.u32 %s40, 1
          %s223 = smul.addr %s222, 8
          %s224 = scalar_lea.vmem [#allocation2], %s223
          %s226 = ssub.s32 128, 128
          %227 = vsyncadd %s221, %s226
          %s228 = smul.addr %s25, 128
          %s229 = scalar_lea.hbm %s0, %s228
          %s231 = sshll.u32 %s224, 4
          %s232 = int_to_ptr.vmem [resolvable:$true] %s231
          %234 = dma.hbm_to_vmem [thread:$0]  %s229, 128, %s232, %s221
        $region36: #{tpu_custom_call.1} parent=31 // pred_fallthru
          _
      $region32: #{tpu_custom_call.1} parent=5 // pred_fallthru
        _
      %p235 = scmp.le.s32.totalorder 1, %s18
      %p236 = scmp.lt.s32.totalorder %s18, 3
      %p237 = pnand %p235, %p236
      %p238 = pneg %p237
      // Predicated region
      $region37: #{tpu_custom_call.1} parent=5 // pred_check
        _
      $region38: #{tpu_custom_call.1} parent=5 // pred_check_branch
        %240 = sbr.rel (%p237) target = $region40
      $region39: #{tpu_custom_call.1} parent=5 // pred_region
        %s241 = ssub.s32 %s18, 1
        %s242 = sand.u32 %s43, 1
        %s243 = scalar_lea.sflag [#allocation3], %s242
        %s244 = sand.u32 %s43, 1
        %s245 = smul.addr %s244, 8
        %s246 = scalar_lea.vmem [#allocation2], %s245
        // Predicated region
        $region41: #{tpu_custom_call.1} parent=39 // pred_check
          %p247 = pneg %p56
        $region42: #{tpu_custom_call.1} parent=39 // pred_check_branch
          %249 = sbr.rel (%p247) target = $region44
        $region43: #{tpu_custom_call.1} parent=39 // pred_region
          %250 = dma.done %s243, 128
        $region44: #{tpu_custom_call.1} parent=39 // pred_fallthru
          _
        // Predicated region
        $region45: #{tpu_custom_call.1} parent=39 // pred_check
          %p251 = pneg %p77
        $region46: #{tpu_custom_call.1} parent=39 // pred_check_branch
          %253 = sbr.rel (%p251) target = $region48
        $region47: #{tpu_custom_call.1} parent=39 // pred_region
          %254 = dma.done [#allocation6], 256
        $region48: #{tpu_custom_call.1} parent=39 // pred_fallthru
          _
        %s255 = sand.u32 %s43, 1
        %s256 = scalar_lea.sflag [#allocation3], %s255
        %s257 = sand.u32 %s43, 1
        %s258 = smul.addr %s257, 8
        %s259 = scalar_lea.vmem [#allocation2], %s258
        %p260 = pneg %p56
        %p261 = pneg %p53
        %p262 = pneg %p77
        %p263 = pneg %p74
        %p264 = scmp.lt.s32.totalorder %s28, 0
        %s265 = scalar_select %p264, %s28, 0
        %s266 = scalar_lea.vmem %s2, %s265
        %p267 = pneg %p103
        %p268 = pneg %p100
        %p269 = pneg %p124
        %p270 = pneg %p121
        %p271 = pneg %p145
        %p272 = pneg %p142
        %p273 = pneg %p173
        %p274 = pneg %p170
        %s275 = sand.u32 %s160, 1
        %s276 = scalar_lea.sflag [#allocation4], %s275
        %s277 = sand.u32 %s160, 1
        %s278 = smul.addr %s277, 8
        %s279 = scalar_lea.vmem [#allocation7], %s278
        %p280 = scmp.lt.s32.totalorder %s28, 0
        %s281 = scalar_select %p280, %s28, 0
        %s282 = scalar_lea.vmem %s2, %s281
        %v284 = vld [vmem:[%s246] sm:$0xff]
        %vm285 = vcmask 261120
        %v286 = vsel %vm285, %v284, 0.0
        %287 = vadd.xlane.f32.xlu0 %v286
        %v288 = vpop.xlane.xlu0 %287
        %v289 = vrcp.pop 32.0
        %v290 = vmul.f32 %v288, %v289
        %v291 = vsub.f32 %v284, %v290
        %v292 = vmul.f32 %v291, %v291
        %v293 = vsel %vm285, %v292, 0.0
        %294 = vadd.xlane.f32.xlu0 %v293
        %v295 = vpop.xlane.xlu0 %294
        %v296 = vmul.f32 %v295, 0.032258064
        %v297 = vrsqrt.pop %v296
        %v298 = vmul.f32 %v296, %v297
        %vm299 = vcmp.eq.f32.partialorder %v296, inf
        %v300 = vsel %vm299, %v296, %v298
        %vm301 = vcmp.eq.f32.partialorder %v296, 0.0
        %v302 = vand.u32 %v296, 2147483648
        %v303 = vsel %vm301, %v302, %v300
        %v304 = vadd.f32 %v303, 1e-06
        %v305 = vrcp.pop %v304
        %v306 = vld [vmem:[%s3] sm:$0x1]
        %v307 = vld [vmem:[%s4] sm:$0x1]
        %v308 = vmul.f32 %v291, %v305
        %v310 = vlaneseq
        %v311 = vshrl.u32 %v310, 7
        %v312 = vsub.s32 0, %v311
        %v313 = vrot.slane %v306, %v312
        %v315 = vmul.f32 %v313, %v308
        %v317 = vlaneseq
        %v318 = vshrl.u32 %v317, 7
        %v319 = vsub.s32 0, %v318
        %v320 = vrot.slane %v307, %v319
        %v322 = vadd.f32 %v315, %v320
        %v323 = vpack.c.bf16 %v322, %v322
        %v324 = vld [vmem:[#allocation5] sm:$0xf]
        %v325 = vld [vmem:[#allocation5 + $0x4] sm:$0xf]
        %v326 = vld [vmem:[#allocation5 + $0x8] sm:$0xf]
        %v327 = vld [vmem:[#allocation5 + $0xc] sm:$0xf]
        %v328 = vld [vmem:[%s282] sm:$0x1]
        %v330 = vlaneseq
        %v331 = vshrl.u32 %v330, 7
        %v332 = vsub.s32 0, %v331
        %v333 = vrot.slane %v328, %v332
        %v339 = vunpack.c.l.b16 %v324
        %v340 = vunpack.c.l.b16 %v325
        %v341 = vunpack.c.l.b16 %v326
        %v342 = vunpack.c.l.b16 %v327
        %v343 = vpack.c.b16 %v340, %v339
        %v344 = vpack.c.b16 %v342, %v341
        %v348 = vsel %vm285, %v323, 0
        %350 = vmatprep.subr.bf16.mxu0 0
        %351 = vmatpush1.bf16.msra.mxu0 %v343
        %352 = vmatprep.subr.bf16.mxu0 0
        %353 = vmatpush1.bf16.msra.mxu0 %v344
        %354 = vmatprep.subr.bf16.mxu0 0
        %355 = vmatpush1.bf16.msra.mxu0 0
        %356 = vmatprep.subr.bf16.mxu0 0
        %357 = vmatpush1.bf16.msra.mxu0 0
        %358 = vmatprep.subr.bf16.mxu0 0
        %359 = vmatpush1.bf16.msra.mxu0 0
        %360 = vmatprep.subr.bf16.mxu0 0
        %361 = vmatpush1.bf16.msra.mxu0 0
        %362 = vmatprep.subr.bf16.mxu0 0
        %363 = vmatpush1.bf16.msra.mxu0 0
        %364 = vmatprep.subr.bf16.mxu0 0
        %365 = vmatpush1.bf16.msra.mxu0 0
        %366 = vmatprep.subr.bf16.mxu0 0
        %367 = vmatpush1.bf16.msra.mxu0 0
        %368 = vmatprep.subr.bf16.mxu0 0
        %369 = vmatpush1.bf16.msra.mxu0 0
        %370 = vmatprep.subr.bf16.mxu0 0
        %371 = vmatpush1.bf16.msra.mxu0 0
        %372 = vmatprep.subr.bf16.mxu0 0
        %373 = vmatpush1.bf16.msra.mxu0 0
        %374 = vmatprep.subr.bf16.mxu0 0
        %375 = vmatpush1.bf16.msra.mxu0 0
        %376 = vmatprep.subr.bf16.mxu0 0
        %377 = vmatpush1.bf16.msra.mxu0 0
        %378 = vmatprep.subr.bf16.mxu0 0
        %379 = vmatpush1.bf16.msra.mxu0 0
        %380 = vmatprep.subr.bf16.mxu0 0
        %381 = vmatpush1.bf16.msra.mxu0 0
        %382 = vmatprep.mubr.bf16.mxu0 0
        %383 = vmatmul.mubr.bf16.gmra.mrb[0].mxu0 %v348
        %v384 = vpop.f32.mrb[0].mxu0
        %v385 = vadd.f32 %v333, %v384
        %v386 = vpop.f32.mrb[0].mxu0
        %v387 = vpop.f32.mrb[0].mxu0
        %v388 = vpop.f32.mrb[0].mxu0
        %389 = vdwg.mxu0
        %v390 = vadd.f32 %v284, %v385
        %391 = vst.msk [vmem:[%s279] sm:$0xff] %vm285, %v390
        %s392 = sand.u32 %s160, 1
        %s393 = scalar_lea.sflag [#allocation4], %s392
        %s394 = sand.u32 %s160, 1
        %s395 = smul.addr %s394, 8
        %s396 = scalar_lea.vmem [#allocation7], %s395
        // Predicated region
        $region49: #{tpu_custom_call.1} parent=39 // pred_check
          %p397 = pneg %p170
        $region50: #{tpu_custom_call.1} parent=39 // pred_check_branch
          %399 = sbr.rel (%p397) target = $region52
        $region51: #{tpu_custom_call.1} parent=39 // pred_region
          %s401 = ssub.s32 128, 128
          %402 = vsyncadd %s393, %s401
          %s403 = sadd.s32 %s28, %s27
          %s404 = smul.addr %s403, 128
          %s405 = scalar_lea.hbm %s5, %s404
          %s407 = sshll.u32 %s396, 4
          %s408 = int_to_ptr.vmem [resolvable:$true] %s407
          %410 = dma.vmem_to_hbm [thread:$0]  %s408, 128, %s405, %s393
        $region52: #{tpu_custom_call.1} parent=39 // pred_fallthru
          _
      $region40: #{tpu_custom_call.1} parent=5 // pred_fallthru
        _
      %p411 = scmp.le.s32.totalorder 2, %s18
      // Predicated region
      $region53: #{tpu_custom_call.1} parent=5 // pred_check
        %p412 = pneg %p411
      $region54: #{tpu_custom_call.1} parent=5 // pred_check_branch
        %414 = sbr.rel (%p412) target = $region56
      $region55: #{tpu_custom_call.1} parent=5 // pred_region
        %s415 = ssub.s32 %s18, 2
        // Predicated region
        $region57: #{tpu_custom_call.1} parent=55 // pred_check
          %p416 = pneg %p176
        $region58: #{tpu_custom_call.1} parent=55 // pred_check_branch
          %418 = sbr.rel (%p416) target = $region60
        $region59: #{tpu_custom_call.1} parent=55 // pred_region
          %s419 = sand.u32 %s161, 1
          %s420 = scalar_lea.sflag [#allocation4], %s419
          %s421 = sand.u32 %s161, 1
          %s422 = smul.addr %s421, 8
          %s423 = scalar_lea.vmem [#allocation7], %s422
          %424 = dma.done %s420, 128
        $region60: #{tpu_custom_call.1} parent=55 // pred_fallthru
          _
      $region56: #{tpu_custom_call.1} parent=5 // pred_fallthru
        _
    $region6: #{tpu_custom_call.1} parent=1 // loop_footer
      %s22 = sadd.s32 1, %s18
    $region7: #{tpu_custom_call.1} parent=1 // loop_footer_branch
      %17 = sbr.rel target = $region3
    $region8: #{tpu_custom_call.1} parent=1 // loop_exit
      _
    %425 = vsyncpa [#allocation3], 1
    %s426 = scalar_lea.sflag [#allocation3], 1
    %427 = vsyncpa %s426, 1
    %428 = vsyncpa [#allocation6], 1
    %429 = vsyncpa [#allocation4], 1
    %s430 = scalar_lea.sflag [#allocation4], 1
    %431 = vsyncpa %s430, 1

</llo_original>
